<compile_context>
chip_gen: v7x
topology: tpu7x:2x2x1
jax: 0.10.0
libtpu: 0.0.40
codegen_flags: <defaults>
</compile_context>

<pallas_src>
import functools

import jax
import jax.numpy as jnp
from jax import lax
from jax.experimental import pallas as pl
from jax.experimental.pallas import tpu as pltpu

EPS = 1e-5


def _conv1d_same(x, w_ref, tap_masks, *, K, use_bf16):
    """Per-tap conv: x (C_in, P) f32, w_ref (K, C_out, C_in).

    tap_masks[k] is a (1, P) f32 mask implementing the SAME zero padding at
    per-sample boundaries and zeroing the lane-pad columns (so padded columns
    contribute exactly 0 to the output and to the BN sums).
    """
    pad = K // 2
    P = x.shape[-1]
    acc = None
    for k in range(K):
        d = k - pad                                   # tap offset: x[p + d]
        if d == 0:
            xs = x
        else:
            # roll(x, s)[p] = x[(p - s) % P]  ->  s = -d gives x[p + d]
            xs = pltpu.roll(x, (-d) % P, axis=1)      # XLU lane rotation
        xs = xs * tap_masks[k]                        # sample-boundary / pad mask
        w_k = w_ref[k]                                # (C_out, C_in)
        if use_bf16:
            w_k = w_k.astype(jnp.bfloat16)
            xs = xs.astype(jnp.bfloat16)
        part = jnp.dot(w_k, xs, preferred_element_type=jnp.float32)
        acc = part if acc is None else acc + part
    return acc                                        # (C_out, P) f32


def _bn_train(z, gamma, beta, inv_count):
    """Training-mode BatchNorm over the lane axis (= batch*length), biased var.

    Padded lane columns are exactly zero on entry, so plain lane sums equal
    the sums over the N*L real columns; inv_count = 1/(N*L).
    """
    s1 = jnp.sum(z, axis=1, keepdims=True)            # (C, 1)
    s2 = jnp.sum(z * z, axis=1, keepdims=True)        # single pass
    mu = s1 * inv_count
    var = jnp.maximum(s2 * inv_count - mu * mu, 0.0)  # cancellation guard
    scale = gamma * lax.rsqrt(var + EPS)              # EUP rsqrt
    return (z - mu) * scale + beta


def cnn_block_kernel(x_ref, w1_ref, g1_ref, b1_ref, w2_ref, g2_ref, b2_ref,
                     o_ref, *, L, n_valid, K, use_bf16):
    x = x_ref[...]                                    # (C, P) f32, P = pad128(N*L)
    _, P = x.shape
    pad = K // 2
    inv_count = 1.0 / n_valid                         # static: 1/(N*L)

    # O(P) lane bookkeeping (built once, shared by both convs).
    col = lax.broadcasted_iota(jnp.int32, (1, P), 1)  # global column index
    l = col % L                                       # position within sample
    real = col < n_valid                              # lane-pad columns -> False
    tap_masks = []
    for k in range(K):
        d = k - pad
        ld = l + d
        valid = (ld >= 0) & (ld < L) & real
        tap_masks.append(valid.astype(x.dtype))       # (1, P) f32

    z = _conv1d_same(x, w1_ref, tap_masks, K=K, use_bf16=use_bf16)
    z = _bn_train(z, g1_ref[...], b1_ref[...], inv_count)
    z = jnp.maximum(z, 0.0)                           # relu

    z = _conv1d_same(z, w2_ref, tap_masks, K=K, use_bf16=use_bf16)
    z = _bn_train(z, g2_ref[...], b2_ref[...], inv_count)

    z = z + x                                         # shortcut (pad cols sliced off)
    o_ref[...] = jnp.maximum(z, 0.0).astype(o_ref.dtype)


def cnn_block(x, w1, g1, b1, w2, g2, b2, *, use_bf16_matmul=False):
    """x: (N, C, L); w*: (C, C, K); g*/b*: (C,). Returns (N, C, L)."""
    N, C, L = x.shape
    K = w1.shape[-1]
    assert K % 2 == 1, "symmetric SAME padding requires odd kernel_size"
    assert K // 2 < L, "kernel half-width must be smaller than the sequence length"
    P = N * L
    P_pad = ((P + 127) // 128) * 128                  # lane-dense multiple of 128

    # ---- wrapper-side layout plumbing (tiny at these shapes) ---------------
    # activations: (N, C, L) -> (C, N*L), zero-padded on the lane axis.
    # TODO(synk): at production sizes fold this transpose into upstream layout
    # or a per-sample BlockSpec grid so no standalone HBM transpose remains.
    x2d = jnp.transpose(x, (1, 0, 2)).reshape(C, P)
    if P_pad > P:
        x2d = jnp.pad(x2d, ((0, 0), (0, P_pad - P)))
    # conv weights: (C_out, C_in, K) -> (K, C_out, C_in) for cheap tap indexing.
    w1t = jnp.transpose(w1, (2, 0, 1))
    w2t = jnp.transpose(w2, (2, 0, 1))
    g1c, b1c = g1.reshape(C, 1), b1.reshape(C, 1)
    g2c, b2c = g2.reshape(C, 1), b2.reshape(C, 1)

    flops = 2 * (2 * C * C * K * P) + 12 * C * P      # two convs + BN/ReLU/residual
    bytes_accessed = (2 * C * P_pad + 2 * K * C * C + 4 * C) * 4
    cost = pl.CostEstimate(flops=flops, transcendentals=2 * C,
                           bytes_accessed=bytes_accessed)

    vmem = pl.BlockSpec(memory_space=pltpu.MemorySpace.VMEM)
    out2d = pl.pallas_call(
        functools.partial(cnn_block_kernel, L=L, n_valid=P, K=K,
                          use_bf16=use_bf16_matmul),
        out_shape=jax.ShapeDtypeStruct((C, P_pad), x.dtype),
        in_specs=[vmem] * 7,
        out_specs=vmem,
        compiler_params=pltpu.CompilerParams(vmem_limit_bytes=32 * 1024 * 1024),
        cost_estimate=cost,
    )(x2d, w1t, g1c, b1c, w2t, g2c, b2c)
    # TODO(synk): at production N*L, add a grid over whole-sample lane tiles
    # ('parallel' for megacore/v7x) with two-pass pl.when BN accumulators, and
    # fuse several CNNBlocks per pallas_call to amortise launch overhead.

    out2d = out2d[:, :P]                              # drop lane padding
    return jnp.transpose(out2d.reshape(C, N, L), (1, 0, 2))


def cnn_block_ref(x, w1, g1, b1, w2, g2, b2):
    """Pure-JAX reference matching the PyTorch forward (training-mode BN)."""
    def conv(inp, w):
        return lax.conv_general_dilated(
            inp, w, window_strides=(1,), padding="SAME",
            dimension_numbers=("NCH", "OIH", "NCH"))

    def bn(inp, gamma, beta):
        mu = jnp.mean(inp, axis=(0, 2), keepdims=True)
        var = jnp.mean((inp - mu) ** 2, axis=(0, 2), keepdims=True)
        g = gamma.reshape(1, -1, 1)
        b = beta.reshape(1, -1, 1)
        return g * (inp - mu) / jnp.sqrt(var + EPS) + b

    z = jax.nn.relu(bn(conv(x, w1), g1, b1))
    z = bn(conv(z, w2), g2, b2)
    return jax.nn.relu(z + x)


if __name__ == "__main__":
    # Small shapes consistent with the module: filters (channels) = 8, seq len = 16.
    N, C, L, K = 2, 8, 16, 3

    key = jax.random.PRNGKey(0)
    kx, kw1, kw2, kg1, kb1, kg2, kb2 = jax.random.split(key, 7)

    x = jax.random.normal(kx, (N, C, L), dtype=jnp.float32)

    # Deterministic synthetic parameters (shapes from nn.Conv1d / nn.BatchNorm1d).
    w1 = 0.1 * jax.random.normal(kw1, (C, C, K), dtype=jnp.float32)   # conv1.weight
    w2 = 0.1 * jax.random.normal(kw2, (C, C, K), dtype=jnp.float32)   # conv2.weight
    g1 = 1.0 + 0.1 * jax.random.normal(kg1, (C,), dtype=jnp.float32)  # bn1.weight
    b1 = 0.1 * jax.random.normal(kb1, (C,), dtype=jnp.float32)        # bn1.bias
    g2 = 1.0 + 0.1 * jax.random.normal(kg2, (C,), dtype=jnp.float32)  # bn2.weight
    b2 = 0.1 * jax.random.normal(kb2, (C,), dtype=jnp.float32)        # bn2.bias

    ref = jax.block_until_ready(cnn_block_ref(x, w1, g1, b1, w2, g2, b2))

    # f32 MXU path: strict tolerance.
    out = jax.block_until_ready(cnn_block(x, w1, g1, b1, w2, g2, b2))
    assert out.shape == (N, C, L)
    assert jnp.allclose(out, ref, rtol=1e-3, atol=1e-3), "f32 path mismatch vs reference"

    # bf16 MXU operands (v6e/v7x fast path): same kernel, looser tolerance.
    out_bf16 = jax.block_until_ready(
        cnn_block(x, w1, g1, b1, w2, g2, b2, use_bf16_matmul=True))
    assert jnp.allclose(out_bf16, ref, rtol=3e-2, atol=3e-2), "bf16 path mismatch vs reference"

    print("KERNEL_OK")
</pallas_src>

<mosaic_0001>
module attributes {stable_mosaic.version = 11 : i64} {
  func.func @cnn_block_kernel(%arg0: memref<8x128xf32, #tpu.memory_space<vmem>>, %arg1: memref<3x8x8xf32, #tpu.memory_space<vmem>>, %arg2: memref<8x1xf32, #tpu.memory_space<vmem>>, %arg3: memref<8x1xf32, #tpu.memory_space<vmem>>, %arg4: memref<3x8x8xf32, #tpu.memory_space<vmem>>, %arg5: memref<8x1xf32, #tpu.memory_space<vmem>>, %arg6: memref<8x1xf32, #tpu.memory_space<vmem>>, %arg7: memref<8x128xf32, #tpu.memory_space<vmem>>) attributes {dimension_semantics = [], scalar_prefetch = 0 : i64, scratch_operands = 0 : i64, tpu.core_type = #tpu.core_type<tc>} {
    %c0 = arith.constant 0 : index
    %c0_0 = arith.constant 0 : index
    %0 = vector.load %arg0[%c0, %c0_0] : memref<8x128xf32, #tpu.memory_space<vmem>>, vector<8x128xf32>
    %1 = tpu.iota {dimensions = array<i32: 1>} : vector<1x128xi32>
    %c16_i32 = arith.constant 16 : i32
    %c0_i32 = arith.constant 0 : i32
    %2 = arith.cmpi eq, %c16_i32, %c0_i32 : i32
    %c1_i32 = arith.constant 1 : i32
    %3 = arith.select %2, %c1_i32, %c16_i32 : i32
    %4 = vector.broadcast %3 : i32 to vector<1x128xi32>
    %5 = arith.remsi %1, %4 : vector<1x128xi32>
    %c0_i32_1 = arith.constant 0 : i32
    %6 = vector.broadcast %c0_i32_1 : i32 to vector<1x128xi32>
    %7 = arith.cmpi ne, %5, %6 : vector<1x128xi32>
    %c0_i32_2 = arith.constant 0 : i32
    %8 = vector.broadcast %c0_i32_2 : i32 to vector<1x128xi32>
    %9 = arith.cmpi slt, %5, %8 : vector<1x128xi32>
    %c0_i32_3 = arith.constant 0 : i32
    %10 = arith.cmpi slt, %3, %c0_i32_3 : i32
    %11 = vector.broadcast %10 : i1 to vector<1x128xi1>
    %12 = vector.broadcast %11 : vector<1x128xi1> to vector<1x128xi1>
    %13 = arith.xori %9, %12 : vector<1x128xi1>
    %14 = arith.andi %13, %7 : vector<1x128xi1>
    %15 = vector.broadcast %3 : i32 to vector<1x128xi32>
    %16 = arith.addi %5, %15 : vector<1x128xi32>
    %17 = arith.select %14, %16, %5 : vector<1x128xi1>, vector<1x128xi32>
    %c32_i32 = arith.constant 32 : i32
    %18 = vector.broadcast %c32_i32 : i32 to vector<1x128xi32>
    %19 = arith.cmpi slt, %1, %18 : vector<1x128xi32>
    %c-1_i32 = arith.constant -1 : i32
    %20 = vector.broadcast %c-1_i32 : i32 to vector<1x128xi32>
    %21 = arith.addi %17, %20 : vector<1x128xi32>
    %c0_i32_4 = arith.constant 0 : i32
    %22 = vector.broadcast %c0_i32_4 : i32 to vector<1x128xi32>
    %23 = arith.cmpi sge, %21, %22 : vector<1x128xi32>
    %c16_i32_5 = arith.constant 16 : i32
    %24 = vector.broadcast %c16_i32_5 : i32 to vector<1x128xi32>
    %25 = arith.cmpi slt, %21, %24 : vector<1x128xi32>
    %26 = arith.andi %23, %25 : vector<1x128xi1>
    %27 = arith.andi %26, %19 : vector<1x128xi1>
    %28 = arith.extui %27 : vector<1x128xi1> to vector<1x128xi32>
    %29 = arith.sitofp %28 : vector<1x128xi32> to vector<1x128xf32>
    %c0_i32_6 = arith.constant 0 : i32
    %30 = vector.broadcast %c0_i32_6 : i32 to vector<1x128xi32>
    %31 = arith.addi %17, %30 : vector<1x128xi32>
    %c0_i32_7 = arith.constant 0 : i32
    %32 = vector.broadcast %c0_i32_7 : i32 to vector<1x128xi32>
    %33 = arith.cmpi sge, %31, %32 : vector<1x128xi32>
    %c16_i32_8 = arith.constant 16 : i32
    %34 = vector.broadcast %c16_i32_8 : i32 to vector<1x128xi32>
    %35 = arith.cmpi slt, %31, %34 : vector<1x128xi32>
    %36 = arith.andi %33, %35 : vector<1x128xi1>
    %37 = arith.andi %36, %19 : vector<1x128xi1>
    %38 = arith.extui %37 : vector<1x128xi1> to vector<1x128xi32>
    %39 = arith.sitofp %38 : vector<1x128xi32> to vector<1x128xf32>
    %c1_i32_9 = arith.constant 1 : i32
    %40 = vector.broadcast %c1_i32_9 : i32 to vector<1x128xi32>
    %41 = arith.addi %17, %40 : vector<1x128xi32>
    %c0_i32_10 = arith.constant 0 : i32
    %42 = vector.broadcast %c0_i32_10 : i32 to vector<1x128xi32>
    %43 = arith.cmpi sge, %41, %42 : vector<1x128xi32>
    %c16_i32_11 = arith.constant 16 : i32
    %44 = vector.broadcast %c16_i32_11 : i32 to vector<1x128xi32>
    %45 = arith.cmpi slt, %41, %44 : vector<1x128xi32>
    %46 = arith.andi %43, %45 : vector<1x128xi1>
    %47 = arith.andi %46, %19 : vector<1x128xi1>
    %48 = arith.extui %47 : vector<1x128xi1> to vector<1x128xi32>
    %49 = arith.sitofp %48 : vector<1x128xi32> to vector<1x128xf32>
    %c1_i32_12 = arith.constant 1 : i32
    %50 = tpu.dynamic_rotate %0 by %c1_i32_12 dim 1 : vector<8x128xf32>, i32 -> vector<8x128xf32>
    %51 = vector.broadcast %29 : vector<1x128xf32> to vector<8x128xf32>
    %52 = arith.mulf %50, %51 : vector<8x128xf32>
    %c0_13 = arith.constant 0 : index
    %c0_14 = arith.constant 0 : index
    %c0_15 = arith.constant 0 : index
    %53 = vector.load %arg1[%c0_13, %c0_14, %c0_15] : memref<3x8x8xf32, #tpu.memory_space<vmem>>, vector<1x8x8xf32>
    %54 = vector.shape_cast %53 : vector<1x8x8xf32> to vector<8x8xf32>
    %cst = arith.constant dense<0.000000e+00> : vector<8x128xf32>
    %55 = tpu.matmul %54, %52, %cst {dimension_numbers = #tpu.dot_dimension_numbers<[1], [0], [0], [1], [0, 0, 1, 1], [], []>} : vector<8x8xf32>, vector<8x128xf32>, vector<8x128xf32> -> vector<8x128xf32>
    %56 = vector.broadcast %39 : vector<1x128xf32> to vector<8x128xf32>
    %57 = arith.mulf %0, %56 : vector<8x128xf32>
    %c1 = arith.constant 1 : index
    %c0_16 = arith.constant 0 : index
    %c0_17 = arith.constant 0 : index
    %58 = vector.load %arg1[%c1, %c0_16, %c0_17] : memref<3x8x8xf32, #tpu.memory_space<vmem>>, vector<1x8x8xf32>
    %59 = vector.shape_cast %58 : vector<1x8x8xf32> to vector<8x8xf32>
    %cst_18 = arith.constant dense<0.000000e+00> : vector<8x128xf32>
    %60 = tpu.matmul %59, %57, %cst_18 {dimension_numbers = #tpu.dot_dimension_numbers<[1], [0], [0], [1], [0, 0, 1, 1], [], []>} : vector<8x8xf32>, vector<8x128xf32>, vector<8x128xf32> -> vector<8x128xf32>
    %61 = arith.addf %55, %60 : vector<8x128xf32>
    %c127_i32 = arith.constant 127 : i32
    %62 = tpu.dynamic_rotate %0 by %c127_i32 dim 1 : vector<8x128xf32>, i32 -> vector<8x128xf32>
    %63 = vector.broadcast %49 : vector<1x128xf32> to vector<8x128xf32>
    %64 = arith.mulf %62, %63 : vector<8x128xf32>
    %c2 = arith.constant 2 : index
    %c0_19 = arith.constant 0 : index
    %c0_20 = arith.constant 0 : index
    %65 = vector.load %arg1[%c2, %c0_19, %c0_20] : memref<3x8x8xf32, #tpu.memory_space<vmem>>, vector<1x8x8xf32>
    %66 = vector.shape_cast %65 : vector<1x8x8xf32> to vector<8x8xf32>
    %cst_21 = arith.constant dense<0.000000e+00> : vector<8x128xf32>
    %67 = tpu.matmul %66, %64, %cst_21 {dimension_numbers = #tpu.dot_dimension_numbers<[1], [0], [0], [1], [0, 0, 1, 1], [], []>} : vector<8x8xf32>, vector<8x128xf32>, vector<8x128xf32> -> vector<8x128xf32>
    %68 = arith.addf %61, %67 : vector<8x128xf32>
    %c0_22 = arith.constant 0 : index
    %c0_23 = arith.constant 0 : index
    %69 = vector.load %arg2[%c0_22, %c0_23] : memref<8x1xf32, #tpu.memory_space<vmem>>, vector<8x1xf32>
    %c0_24 = arith.constant 0 : index
    %c0_25 = arith.constant 0 : index
    %70 = vector.load %arg3[%c0_24, %c0_25] : memref<8x1xf32, #tpu.memory_space<vmem>>, vector<8x1xf32>
    %cst_26 = arith.constant dense<0.000000e+00> : vector<8xf32>
    %71 = vector.multi_reduction <add>, %68, %cst_26 [1] : vector<8x128xf32> to vector<8xf32>
    %72 = vector.shape_cast %71 : vector<8xf32> to vector<8x1xf32>
    %73 = arith.mulf %68, %68 : vector<8x128xf32>
    %cst_27 = arith.constant dense<0.000000e+00> : vector<8xf32>
    %74 = vector.multi_reduction <add>, %73, %cst_27 [1] : vector<8x128xf32> to vector<8xf32>
    %75 = vector.shape_cast %74 : vector<8xf32> to vector<8x1xf32>
    %cst_28 = arith.constant 3.125000e-02 : f32
    %76 = vector.broadcast %cst_28 : f32 to vector<8x1xf32>
    %77 = arith.mulf %72, %76 : vector<8x1xf32>
    %cst_29 = arith.constant 3.125000e-02 : f32
    %78 = vector.broadcast %cst_29 : f32 to vector<8x1xf32>
    %79 = arith.mulf %75, %78 : vector<8x1xf32>
    %80 = arith.mulf %77, %77 : vector<8x1xf32>
    %81 = arith.subf %79, %80 : vector<8x1xf32>
    %cst_30 = arith.constant 0.000000e+00 : f32
    %82 = vector.broadcast %cst_30 : f32 to vector<8x1xf32>
    %83 = arith.maximumf %81, %82 : vector<8x1xf32>
    %cst_31 = arith.constant 9.99999974E-6 : f32
    %84 = vector.broadcast %cst_31 : f32 to vector<8x1xf32>
    %85 = arith.addf %83, %84 : vector<8x1xf32>
    %86 = math.rsqrt %85 : vector<8x1xf32>
    %87 = arith.mulf %69, %86 : vector<8x1xf32>
    %88 = vector.broadcast %77 : vector<8x1xf32> to vector<8x128xf32>
    %89 = arith.subf %68, %88 : vector<8x128xf32>
    %90 = vector.broadcast %87 : vector<8x1xf32> to vector<8x128xf32>
    %91 = arith.mulf %89, %90 : vector<8x128xf32>
    %92 = vector.broadcast %70 : vector<8x1xf32> to vector<8x128xf32>
    %93 = arith.addf %91, %92 : vector<8x128xf32>
    %cst_32 = arith.constant 0.000000e+00 : f32
    %94 = vector.broadcast %cst_32 : f32 to vector<8x128xf32>
    %95 = arith.maximumf %93, %94 : vector<8x128xf32>
    %c1_i32_33 = arith.constant 1 : i32
    %96 = tpu.dynamic_rotate %95 by %c1_i32_33 dim 1 : vector<8x128xf32>, i32 -> vector<8x128xf32>
    %97 = vector.broadcast %29 : vector<1x128xf32> to vector<8x128xf32>
    %98 = arith.mulf %96, %97 : vector<8x128xf32>
    %c0_34 = arith.constant 0 : index
    %c0_35 = arith.constant 0 : index
    %c0_36 = arith.constant 0 : index
    %99 = vector.load %arg4[%c0_34, %c0_35, %c0_36] : memref<3x8x8xf32, #tpu.memory_space<vmem>>, vector<1x8x8xf32>
    %100 = vector.shape_cast %99 : vector<1x8x8xf32> to vector<8x8xf32>
    %cst_37 = arith.constant dense<0.000000e+00> : vector<8x128xf32>
    %101 = tpu.matmul %100, %98, %cst_37 {dimension_numbers = #tpu.dot_dimension_numbers<[1], [0], [0], [1], [0, 0, 1, 1], [], []>} : vector<8x8xf32>, vector<8x128xf32>, vector<8x128xf32> -> vector<8x128xf32>
    %102 = vector.broadcast %39 : vector<1x128xf32> to vector<8x128xf32>
    %103 = arith.mulf %95, %102 : vector<8x128xf32>
    %c1_38 = arith.constant 1 : index
    %c0_39 = arith.constant 0 : index
    %c0_40 = arith.constant 0 : index
    %104 = vector.load %arg4[%c1_38, %c0_39, %c0_40] : memref<3x8x8xf32, #tpu.memory_space<vmem>>, vector<1x8x8xf32>
    %105 = vector.shape_cast %104 : vector<1x8x8xf32> to vector<8x8xf32>
    %cst_41 = arith.constant dense<0.000000e+00> : vector<8x128xf32>
    %106 = tpu.matmul %105, %103, %cst_41 {dimension_numbers = #tpu.dot_dimension_numbers<[1], [0], [0], [1], [0, 0, 1, 1], [], []>} : vector<8x8xf32>, vector<8x128xf32>, vector<8x128xf32> -> vector<8x128xf32>
    %107 = arith.addf %101, %106 : vector<8x128xf32>
    %c127_i32_42 = arith.constant 127 : i32
    %108 = tpu.dynamic_rotate %95 by %c127_i32_42 dim 1 : vector<8x128xf32>, i32 -> vector<8x128xf32>
    %109 = vector.broadcast %49 : vector<1x128xf32> to vector<8x128xf32>
    %110 = arith.mulf %108, %109 : vector<8x128xf32>
    %c2_43 = arith.constant 2 : index
    %c0_44 = arith.constant 0 : index
    %c0_45 = arith.constant 0 : index
    %111 = vector.load %arg4[%c2_43, %c0_44, %c0_45] : memref<3x8x8xf32, #tpu.memory_space<vmem>>, vector<1x8x8xf32>
    %112 = vector.shape_cast %111 : vector<1x8x8xf32> to vector<8x8xf32>
    %cst_46 = arith.constant dense<0.000000e+00> : vector<8x128xf32>
    %113 = tpu.matmul %112, %110, %cst_46 {dimension_numbers = #tpu.dot_dimension_numbers<[1], [0], [0], [1], [0, 0, 1, 1], [], []>} : vector<8x8xf32>, vector<8x128xf32>, vector<8x128xf32> -> vector<8x128xf32>
    %114 = arith.addf %107, %113 : vector<8x128xf32>
    %c0_47 = arith.constant 0 : index
    %c0_48 = arith.constant 0 : index
    %115 = vector.load %arg5[%c0_47, %c0_48] : memref<8x1xf32, #tpu.memory_space<vmem>>, vector<8x1xf32>
    %c0_49 = arith.constant 0 : index
    %c0_50 = arith.constant 0 : index
    %116 = vector.load %arg6[%c0_49, %c0_50] : memref<8x1xf32, #tpu.memory_space<vmem>>, vector<8x1xf32>
    %cst_51 = arith.constant dense<0.000000e+00> : vector<8xf32>
    %117 = vector.multi_reduction <add>, %114, %cst_51 [1] : vector<8x128xf32> to vector<8xf32>
    %118 = vector.shape_cast %117 : vector<8xf32> to vector<8x1xf32>
    %119 = arith.mulf %114, %114 : vector<8x128xf32>
    %cst_52 = arith.constant dense<0.000000e+00> : vector<8xf32>
    %120 = vector.multi_reduction <add>, %119, %cst_52 [1] : vector<8x128xf32> to vector<8xf32>
    %121 = vector.shape_cast %120 : vector<8xf32> to vector<8x1xf32>
    %cst_53 = arith.constant 3.125000e-02 : f32
    %122 = vector.broadcast %cst_53 : f32 to vector<8x1xf32>
    %123 = arith.mulf %118, %122 : vector<8x1xf32>
    %cst_54 = arith.constant 3.125000e-02 : f32
    %124 = vector.broadcast %cst_54 : f32 to vector<8x1xf32>
    %125 = arith.mulf %121, %124 : vector<8x1xf32>
    %126 = arith.mulf %123, %123 : vector<8x1xf32>
    %127 = arith.subf %125, %126 : vector<8x1xf32>
    %cst_55 = arith.constant 0.000000e+00 : f32
    %128 = vector.broadcast %cst_55 : f32 to vector<8x1xf32>
    %129 = arith.maximumf %127, %128 : vector<8x1xf32>
    %cst_56 = arith.constant 9.99999974E-6 : f32
    %130 = vector.broadcast %cst_56 : f32 to vector<8x1xf32>
    %131 = arith.addf %129, %130 : vector<8x1xf32>
    %132 = math.rsqrt %131 : vector<8x1xf32>
    %133 = arith.mulf %115, %132 : vector<8x1xf32>
    %134 = vector.broadcast %123 : vector<8x1xf32> to vector<8x128xf32>
    %135 = arith.subf %114, %134 : vector<8x128xf32>
    %136 = vector.broadcast %133 : vector<8x1xf32> to vector<8x128xf32>
    %137 = arith.mulf %135, %136 : vector<8x128xf32>
    %138 = vector.broadcast %116 : vector<8x1xf32> to vector<8x128xf32>
    %139 = arith.addf %137, %138 : vector<8x128xf32>
    %140 = arith.addf %139, %0 : vector<8x128xf32>
    %cst_57 = arith.constant 0.000000e+00 : f32
    %141 = vector.broadcast %cst_57 : f32 to vector<8x128xf32>
    %142 = arith.maximumf %140, %141 : vector<8x128xf32>
    %c0_58 = arith.constant 0 : index
    %c0_59 = arith.constant 0 : index
    %143 = vector.load %arg7[%c0_58, %c0_59] : memref<8x128xf32, #tpu.memory_space<vmem>>, vector<8x128xf32>
    tpu.vector_store %arg7[%c0_58, %c0_59], %142 {strides = array<i32>} : memref<8x128xf32, #tpu.memory_space<vmem>>, vector<8x128xf32>,
    return
  }
}

</mosaic_0001>

<llo_original>
// kernel: tpu_custom_call.1
$region0: #{tpu_custom_call.1}
  #allocation0 [shape = 'u32[]', space=smem, size = 0x4, offset = 0x4, fixed_abs, tag = 'smem constant byte address 0x4 - core index']
  #allocation1 [shape = 'u32[144,128]{1,0:T(1,128)}', space=vmem, size = 0x12000, scoped, tag = 'internal scratch']
  %s0 = inlined_call_operand.hbm [shape: f32[8,128], index: 0, kind: input, shape index: {}]
  %s1 = inlined_call_operand.vmem [shape: f32[3,8,8], index: 1, kind: input, shape index: {}]
  %s2 = inlined_call_operand.vmem [shape: f32[8,1], index: 2, kind: input, shape index: {}]
  %s3 = inlined_call_operand.vmem [shape: f32[8,1], index: 3, kind: input, shape index: {}]
  %s4 = inlined_call_operand.vmem [shape: f32[3,8,8], index: 4, kind: input, shape index: {}]
  %s5 = inlined_call_operand.vmem [shape: f32[8,1], index: 5, kind: input, shape index: {}]
  %s6 = inlined_call_operand.vmem [shape: f32[8,1], index: 6, kind: input, shape index: {}]
  %s7 = inlined_call_operand.hbm [shape: f32[8,128], index: 7, kind: output, shape index: {}]
  %s8 = sld [smem:[#allocation0]]
  $region42: #{tpu_custom_call.1} parent=0
    _
  %s10 = ssub.s32 1, %s8
  %s11 = scalar_select 0, %s10, %s8
  $region1: #{tpu_custom_call.1} parent=0
    #allocation2 [shape = 'u8[4096]{0}', space=vmem, size = 0x1000, scoped, tag = 'input window, operand 0, single buffered']
    #allocation3 [shape = 's32[1]{0}', space=sflag, size = 0x4, scoped, tag = 'scoped memory for tpu_custom_call.1']
    #allocation4 [shape = 's32[1]{0}', space=sflag, size = 0x4, scoped, tag = 'scoped memory for tpu_custom_call.1']
    #allocation5 [shape = 'u8[4096]{0}', space=vmem, size = 0x1000, scoped, tag = 'output window, operand 0, single buffered']
    %12 = vsyncpa [#allocation3], 0
    %13 = vsyncpa [#allocation4], 0
    // Predicated region
    $region2: #{tpu_custom_call.1} parent=1 // pred_check
      _
    $region3: #{tpu_custom_call.1} parent=1 // pred_check_branch
      %15 = sbr.rel (0) target = $region5
    $region4: #{tpu_custom_call.1} parent=1 // pred_region
      %s17 = ssub.s32 128, 128
      %18 = vsyncadd [#allocation3], %s17
      %s20 = sshll.u32 [#allocation2], 4
      %s21 = int_to_ptr.vmem [resolvable:$true] %s20
      %23 = dma.hbm_to_vmem [thread:$0]  %s0, 128, %s21, [#allocation3]
    $region5: #{tpu_custom_call.1} parent=1 // pred_fallthru
      _
    // Predicated region
    $region6: #{tpu_custom_call.1} parent=1 // pred_check
      _
    $region7: #{tpu_custom_call.1} parent=1 // pred_check_branch
      %25 = sbr.rel (0) target = $region9
    $region8: #{tpu_custom_call.1} parent=1 // pred_region
      _
    $region9: #{tpu_custom_call.1} parent=1 // pred_fallthru
      _
    // Predicated region
    $region10: #{tpu_custom_call.1} parent=1 // pred_check
      _
    $region11: #{tpu_custom_call.1} parent=1 // pred_check_branch
      %27 = sbr.rel (0) target = $region13
    $region12: #{tpu_custom_call.1} parent=1 // pred_region
      _
    $region13: #{tpu_custom_call.1} parent=1 // pred_fallthru
      _
    // Predicated region
    $region14: #{tpu_custom_call.1} parent=1 // pred_check
      _
    $region15: #{tpu_custom_call.1} parent=1 // pred_check_branch
      %29 = sbr.rel (0) target = $region17
    $region16: #{tpu_custom_call.1} parent=1 // pred_region
      _
    $region17: #{tpu_custom_call.1} parent=1 // pred_fallthru
      _
    // Predicated region
    $region18: #{tpu_custom_call.1} parent=1 // pred_check
      _
    $region19: #{tpu_custom_call.1} parent=1 // pred_check_branch
      %31 = sbr.rel (0) target = $region21
    $region20: #{tpu_custom_call.1} parent=1 // pred_region
      _
    $region21: #{tpu_custom_call.1} parent=1 // pred_fallthru
      _
    // Predicated region
    $region22: #{tpu_custom_call.1} parent=1 // pred_check
      _
    $region23: #{tpu_custom_call.1} parent=1 // pred_check_branch
      %33 = sbr.rel (0) target = $region25
    $region24: #{tpu_custom_call.1} parent=1 // pred_region
      _
    $region25: #{tpu_custom_call.1} parent=1 // pred_fallthru
      _
    // Predicated region
    $region26: #{tpu_custom_call.1} parent=1 // pred_check
      _
    $region27: #{tpu_custom_call.1} parent=1 // pred_check_branch
      %35 = sbr.rel (0) target = $region29
    $region28: #{tpu_custom_call.1} parent=1 // pred_region
      _
    $region29: #{tpu_custom_call.1} parent=1 // pred_fallthru
      _
    // Predicated region
    $region30: #{tpu_custom_call.1} parent=1 // pred_check
      _
    $region31: #{tpu_custom_call.1} parent=1 // pred_check_branch
      %37 = sbr.rel (0) target = $region33
    $region32: #{tpu_custom_call.1} parent=1 // pred_region
      %38 = dma.done [#allocation3], 128
    $region33: #{tpu_custom_call.1} parent=1 // pred_fallthru
      _
    %v39 = vld [vmem:[#allocation2] sm:$0xff]
    %v40 = vlaneseq
    %v41 = vand.u32 %v40, 127
    %vm42 = vcmp.lt.s32.totalorder %v41, 0
    %v43 = vsub.s32 0, %v41
    %v44 = vsel %vm42, %v43, %v41
    %v45 = vshrl.u32 %v44, 4
    %v46 = vand.u32 %v44, 15
    %v47 = vsub.s32 0, %v46
    %v48 = vsel %vm42, %v47, %v46
    %vm49 = vcmp.ne.s32.totalorder %v48, 0
    %vm50 = vcmp.lt.s32.totalorder %v48, 0
    %vm51 = vmand %vm50, %vm49
    %v52 = vadd.s32 %v48, 16
    %v53 = vsel %vm51, %v52, %v48
    %vm54 = vcmp.lt.s32.totalorder %v41, 32
    %v55 = vadd.s32 %v53, 4294967295
    %vm56 = vcmp.ge.s32.totalorder %v55, 0
    %vm57 = vcmp.lt.s32.totalorder %v55, 16
    %vm58 = vmand %vm56, %vm57
    %vm59 = vmand %vm58, %vm54
    %v60 = vsel %vm59, 1, 0
    %v61 = vcvt.s32.f32 %v60
    %vm62 = vcmp.ge.s32.totalorder %v53, 0
    %vm63 = vcmp.lt.s32.totalorder %v53, 16
    %vm64 = vmand %vm62, %vm63
    %vm65 = vmand %vm64, %vm54
    %v66 = vsel %vm65, 1, 0
    %v67 = vcvt.s32.f32 %v66
    %v68 = vadd.s32 %v53, 1
    %vm69 = vcmp.ge.s32.totalorder %v68, 0
    %vm70 = vcmp.lt.s32.totalorder %v68, 16
    %vm71 = vmand %vm69, %vm70
    %vm72 = vmand %vm71, %vm54
    %v73 = vsel %vm72, 1, 0
    %v74 = vcvt.s32.f32 %v73
    %75 = vrot.lane.b32.xlu0 %v39, 1
    %v76 = vpop.permute.xlu0 %75
    %v77 = vmul.f32 %v76, %v61
    %v78 = vld [vmem:[%s1] sm:$0xff]
    %v79 = vmul.f32 %v39, %v67
    %s80 = scalar_lea.vmem %s1, 8
    %v81 = vld [vmem:[%s80] sm:$0xff]
    %vm82 = vcmask 64512
    %v84 = vsel %vm82, %v81, 0
    %86 = vmatprep.subr.mxu0 0.0
    %87 = vmatpush1.msra.mxu0 %v79
    %88 = vmatprep.subr.mxu0 0.0
    %89 = vmatpush1.msra.mxu0 0.0
    %90 = vmatprep.subr.mxu0 0.0
    %91 = vmatpush1.msra.mxu0 0.0
    %92 = vmatprep.subr.mxu0 0.0
    %93 = vmatpush1.msra.mxu0 0.0
    %94 = vmatprep.subr.mxu0 0.0
    %95 = vmatpush1.msra.mxu0 0.0
    %96 = vmatprep.subr.mxu0 0.0
    %97 = vmatpush1.msra.mxu0 0.0
    %98 = vmatprep.subr.mxu0 0.0
    %99 = vmatpush1.msra.mxu0 0.0
    %100 = vmatprep.subr.mxu0 0.0
    %101 = vmatpush1.msra.mxu0 0.0
    %102 = vmatprep.subr.mxu0 0.0
    %103 = vmatpush1.msra.mxu0 0.0
    %104 = vmatprep.subr.mxu0 0.0
    %105 = vmatpush1.msra.mxu0 0.0
    %106 = vmatprep.subr.mxu0 0.0
    %107 = vmatpush1.msra.mxu0 0.0
    %108 = vmatprep.subr.mxu0 0.0
    %109 = vmatpush1.msra.mxu0 0.0
    %110 = vmatprep.subr.mxu0 0.0
    %111 = vmatpush1.msra.mxu0 0.0
    %112 = vmatprep.subr.mxu0 0.0
    %113 = vmatpush1.msra.mxu0 0.0
    %114 = vmatprep.subr.mxu0 0.0
    %115 = vmatpush1.msra.mxu0 0.0
    %116 = vmatprep.subr.mxu0 0.0
    %117 = vmatpush1.msra.mxu0 0.0
    %118 = vmatprep.subr.mxu0 0.0
    %119 = vmatpush1.msra.mxu0 0.0
    %120 = vmatprep.subr.mxu0 0.0
    %121 = vmatpush1.msra.mxu0 0.0
    %122 = vmatprep.subr.mxu0 0.0
    %123 = vmatpush1.msra.mxu0 0.0
    %124 = vmatprep.subr.mxu0 0.0
    %125 = vmatpush1.msra.mxu0 0.0
    %126 = vmatprep.subr.mxu0 0.0
    %127 = vmatpush1.msra.mxu0 0.0
    %128 = vmatprep.subr.mxu0 0.0
    %129 = vmatpush1.msra.mxu0 0.0
    %130 = vmatprep.subr.mxu0 0.0
    %131 = vmatpush1.msra.mxu0 0.0
    %132 = vmatprep.subr.mxu0 0.0
    %133 = vmatpush1.msra.mxu0 0.0
    %134 = vmatprep.subr.mxu0 0.0
    %135 = vmatpush1.msra.mxu0 0.0
    %136 = vmatprep.subr.mxu0 0.0
    %137 = vmatpush1.msra.mxu0 0.0
    %138 = vmatprep.subr.mxu0 0.0
    %139 = vmatpush1.msra.mxu0 0.0
    %140 = vmatprep.subr.mxu0 0.0
    %141 = vmatpush1.msra.mxu0 0.0
    %142 = vmatprep.subr.mxu0 0.0
    %143 = vmatpush1.msra.mxu0 0.0
    %144 = vmatprep.subr.mxu0 0.0
    %145 = vmatpush1.msra.mxu0 0.0
    %146 = vmatprep.subr.mxu0 0.0
    %147 = vmatpush1.msra.mxu0 0.0
    %148 = vmatprep.subr.mxu0 0.0
    %149 = vmatpush1.msra.mxu0 0.0
    %150 = vmatprep.mubr.f32.mxu0 0.0
    %151 = vmatmul.mubr.f32.gmra.mrb[0].mxu0 %v84
    %v152 = vpop.f32.mrb[0].mxu0
    %v153 = vadd.f32 0.0, %v152
    %v154 = vpop.f32.mrb[0].mxu0
    %155 = vdwg.mxu0
    %v157 = vsel %vm82, %v78, 0
    %159 = vmatprep.subr.mxu0 0.0
    %160 = vmatpush1.msra.mxu0 %v77
    %161 = vmatprep.subr.mxu0 0.0
    %162 = vmatpush1.msra.mxu0 0.0
    %163 = vmatprep.subr.mxu0 0.0
    %164 = vmatpush1.msra.mxu0 0.0
    %165 = vmatprep.subr.mxu0 0.0
    %166 = vmatpush1.msra.mxu0 0.0
    %167 = vmatprep.subr.mxu0 0.0
    %168 = vmatpush1.msra.mxu0 0.0
    %169 = vmatprep.subr.mxu0 0.0
    %170 = vmatpush1.msra.mxu0 0.0
    %171 = vmatprep.subr.mxu0 0.0
    %172 = vmatpush1.msra.mxu0 0.0
    %173 = vmatprep.subr.mxu0 0.0
    %174 = vmatpush1.msra.mxu0 0.0
    %175 = vmatprep.subr.mxu0 0.0
    %176 = vmatpush1.msra.mxu0 0.0
    %177 = vmatprep.subr.mxu0 0.0
    %178 = vmatpush1.msra.mxu0 0.0
    %179 = vmatprep.subr.mxu0 0.0
    %180 = vmatpush1.msra.mxu0 0.0
    %181 = vmatprep.subr.mxu0 0.0
    %182 = vmatpush1.msra.mxu0 0.0
    %183 = vmatprep.subr.mxu0 0.0
    %184 = vmatpush1.msra.mxu0 0.0
    %185 = vmatprep.subr.mxu0 0.0
    %186 = vmatpush1.msra.mxu0 0.0
    %187 = vmatprep.subr.mxu0 0.0
    %188 = vmatpush1.msra.mxu0 0.0
    %189 = vmatprep.subr.mxu0 0.0
    %190 = vmatpush1.msra.mxu0 0.0
    %191 = vmatprep.subr.mxu0 0.0
    %192 = vmatpush1.msra.mxu0 0.0
    %193 = vmatprep.subr.mxu0 0.0
    %194 = vmatpush1.msra.mxu0 0.0
    %195 = vmatprep.subr.mxu0 0.0
    %196 = vmatpush1.msra.mxu0 0.0
    %197 = vmatprep.subr.mxu0 0.0
    %198 = vmatpush1.msra.mxu0 0.0
    %199 = vmatprep.subr.mxu0 0.0
    %200 = vmatpush1.msra.mxu0 0.0
    %201 = vmatprep.subr.mxu0 0.0
    %202 = vmatpush1.msra.mxu0 0.0
    %203 = vmatprep.subr.mxu0 0.0
    %204 = vmatpush1.msra.mxu0 0.0
    %205 = vmatprep.subr.mxu0 0.0
    %206 = vmatpush1.msra.mxu0 0.0
    %207 = vmatprep.subr.mxu0 0.0
    %208 = vmatpush1.msra.mxu0 0.0
    %209 = vmatprep.subr.mxu0 0.0
    %210 = vmatpush1.msra.mxu0 0.0
    %211 = vmatprep.subr.mxu0 0.0
    %212 = vmatpush1.msra.mxu0 0.0
    %213 = vmatprep.subr.mxu0 0.0
    %214 = vmatpush1.msra.mxu0 0.0
    %215 = vmatprep.subr.mxu0 0.0
    %216 = vmatpush1.msra.mxu0 0.0
    %217 = vmatprep.subr.mxu0 0.0
    %218 = vmatpush1.msra.mxu0 0.0
    %219 = vmatprep.subr.mxu0 0.0
    %220 = vmatpush1.msra.mxu0 0.0
    %221 = vmatprep.subr.mxu0 0.0
    %222 = vmatpush1.msra.mxu0 0.0
    %223 = vmatprep.mubr.f32.mxu0 0.0
    %224 = vmatmul.mubr.f32.gmra.mrb[0].mxu0 %v157
    %v225 = vpop.f32.mrb[0].mxu0
    %v226 = vadd.f32 %v153, %v225
    %v227 = vpop.f32.mrb[0].mxu0
    %228 = vdwg.mxu0
    %229 = vrot.lane.b32.xlu0 %v39, 127
    %v230 = vpop.permute.xlu0 %229
    %v231 = vmul.f32 %v230, %v74
    %s232 = scalar_lea.vmem %s1, 16
    %v233 = vld [vmem:[%s232] sm:$0xff]
    %v235 = vsel %vm82, %v233, 0
    %237 = vmatprep.subr.mxu0 0.0
    %238 = vmatpush1.msra.mxu0 %v231
    %239 = vmatprep.subr.mxu0 0.0
    %240 = vmatpush1.msra.mxu0 0.0
    %241 = vmatprep.subr.mxu0 0.0
    %242 = vmatpush1.msra.mxu0 0.0
    %243 = vmatprep.subr.mxu0 0.0
    %244 = vmatpush1.msra.mxu0 0.0
    %245 = vmatprep.subr.mxu0 0.0
    %246 = vmatpush1.msra.mxu0 0.0
    %247 = vmatprep.subr.mxu0 0.0
    %248 = vmatpush1.msra.mxu0 0.0
    %249 = vmatprep.subr.mxu0 0.0
    %250 = vmatpush1.msra.mxu0 0.0
    %251 = vmatprep.subr.mxu0 0.0
    %252 = vmatpush1.msra.mxu0 0.0
    %253 = vmatprep.subr.mxu0 0.0
    %254 = vmatpush1.msra.mxu0 0.0
    %255 = vmatprep.subr.mxu0 0.0
    %256 = vmatpush1.msra.mxu0 0.0
    %257 = vmatprep.subr.mxu0 0.0
    %258 = vmatpush1.msra.mxu0 0.0
    %259 = vmatprep.subr.mxu0 0.0
    %260 = vmatpush1.msra.mxu0 0.0
    %261 = vmatprep.subr.mxu0 0.0
    %262 = vmatpush1.msra.mxu0 0.0
    %263 = vmatprep.subr.mxu0 0.0
    %264 = vmatpush1.msra.mxu0 0.0
    %265 = vmatprep.subr.mxu0 0.0
    %266 = vmatpush1.msra.mxu0 0.0
    %267 = vmatprep.subr.mxu0 0.0
    %268 = vmatpush1.msra.mxu0 0.0
    %269 = vmatprep.subr.mxu0 0.0
    %270 = vmatpush1.msra.mxu0 0.0
    %271 = vmatprep.subr.mxu0 0.0
    %272 = vmatpush1.msra.mxu0 0.0
    %273 = vmatprep.subr.mxu0 0.0
    %274 = vmatpush1.msra.mxu0 0.0
    %275 = vmatprep.subr.mxu0 0.0
    %276 = vmatpush1.msra.mxu0 0.0
    %277 = vmatprep.subr.mxu0 0.0
    %278 = vmatpush1.msra.mxu0 0.0
    %279 = vmatprep.subr.mxu0 0.0
    %280 = vmatpush1.msra.mxu0 0.0
    %281 = vmatprep.subr.mxu0 0.0
    %282 = vmatpush1.msra.mxu0 0.0
    %283 = vmatprep.subr.mxu0 0.0
    %284 = vmatpush1.msra.mxu0 0.0
    %285 = vmatprep.subr.mxu0 0.0
    %286 = vmatpush1.msra.mxu0 0.0
    %287 = vmatprep.subr.mxu0 0.0
    %288 = vmatpush1.msra.mxu0 0.0
    %289 = vmatprep.subr.mxu0 0.0
    %290 = vmatpush1.msra.mxu0 0.0
    %291 = vmatprep.subr.mxu0 0.0
    %292 = vmatpush1.msra.mxu0 0.0
    %293 = vmatprep.subr.mxu0 0.0
    %294 = vmatpush1.msra.mxu0 0.0
    %295 = vmatprep.subr.mxu0 0.0
    %296 = vmatpush1.msra.mxu0 0.0
    %297 = vmatprep.subr.mxu0 0.0
    %298 = vmatpush1.msra.mxu0 0.0
    %299 = vmatprep.subr.mxu0 0.0
    %300 = vmatpush1.msra.mxu0 0.0
    %301 = vmatprep.mubr.f32.mxu0 0.0
    %302 = vmatmul.mubr.f32.gmra.mrb[0].mxu0 %v235
    %v303 = vpop.f32.mrb[0].mxu0
    %v304 = vadd.f32 0.0, %v303
    %v305 = vpop.f32.mrb[0].mxu0
    %306 = vdwg.mxu0
    %v307 = vadd.f32 %v226, %v304
    %v308 = vld [vmem:[%s2] sm:$0xff]
    %v309 = vld [vmem:[%s3] sm:$0xff]
    %310 = vadd.xlane.f32.xlu0 %v307
    %v311 = vpop.xlane.xlu0 %310
    %v312 = vmul.f32 %v307, %v307
    %313 = vadd.xlane.f32.xlu0 %v312
    %v314 = vpop.xlane.xlu0 %313
    %v315 = vmul.f32 %v311, 0.03125
    %v316 = vmul.f32 %v314, 0.03125
    %v317 = vmul.f32 %v315, %v315
    %v318 = vsub.f32 %v316, %v317
    %v319 = vmax.f32 %v318, 0.0
    %v320 = vadd.f32 %v319, 1e-05
    %v321 = vrsqrt.pop %v320
    %v322 = vmul.f32 %v308, %v321
    %v323 = vsub.f32 %v307, %v315
    %325 = vset.pattern.permute.xlu0 0
    %326 = vperm.xlu0 %325, %v322
    %v327 = vpop.permute.xlu0 %326
    %v329 = vmul.f32 %v323, %v327
    %331 = vset.pattern.permute.xlu0 0
    %332 = vperm.xlu0 %331, %v309
    %v333 = vpop.permute.xlu0 %332
    %v335 = vadd.f32 %v329, %v333
    %v336 = vmax.f32 %v335, 0.0
    %337 = vrot.lane.b32.xlu0 %v336, 1
    %v338 = vpop.permute.xlu0 %337
    %v339 = vmul.f32 %v338, %v61
    %v340 = vld [vmem:[%s4] sm:$0xff]
    %v341 = vmul.f32 %v336, %v67
    %s342 = scalar_lea.vmem %s4, 8
    %v343 = vld [vmem:[%s342] sm:$0xff]
    %v345 = vsel %vm82, %v343, 0
    %347 = vmatprep.subr.mxu0 0.0
    %348 = vmatpush1.msra.mxu0 %v341
    %349 = vmatprep.subr.mxu0 0.0
    %350 = vmatpush1.msra.mxu0 0.0
    %351 = vmatprep.subr.mxu0 0.0
    %352 = vmatpush1.msra.mxu0 0.0
    %353 = vmatprep.subr.mxu0 0.0
    %354 = vmatpush1.msra.mxu0 0.0
    %355 = vmatprep.subr.mxu0 0.0
    %356 = vmatpush1.msra.mxu0 0.0
    %357 = vmatprep.subr.mxu0 0.0
    %358 = vmatpush1.msra.mxu0 0.0
    %359 = vmatprep.subr.mxu0 0.0
    %360 = vmatpush1.msra.mxu0 0.0
    %361 = vmatprep.subr.mxu0 0.0
    %362 = vmatpush1.msra.mxu0 0.0
    %363 = vmatprep.subr.mxu0 0.0
    %364 = vmatpush1.msra.mxu0 0.0
    %365 = vmatprep.subr.mxu0 0.0
    %366 = vmatpush1.msra.mxu0 0.0
    %367 = vmatprep.subr.mxu0 0.0
    %368 = vmatpush1.msra.mxu0 0.0
    %369 = vmatprep.subr.mxu0 0.0
    %370 = vmatpush1.msra.mxu0 0.0
    %371 = vmatprep.subr.mxu0 0.0
    %372 = vmatpush1.msra.mxu0 0.0
    %373 = vmatprep.subr.mxu0 0.0
    %374 = vmatpush1.msra.mxu0 0.0
    %375 = vmatprep.subr.mxu0 0.0
    %376 = vmatpush1.msra.mxu0 0.0
    %377 = vmatprep.subr.mxu0 0.0
    %378 = vmatpush1.msra.mxu0 0.0
    %379 = vmatprep.subr.mxu0 0.0
    %380 = vmatpush1.msra.mxu0 0.0
    %381 = vmatprep.subr.mxu0 0.0
    %382 = vmatpush1.msra.mxu0 0.0
    %383 = vmatprep.subr.mxu0 0.0
    %384 = vmatpush1.msra.mxu0 0.0
    %385 = vmatprep.subr.mxu0 0.0
    %386 = vmatpush1.msra.mxu0 0.0
    %387 = vmatprep.subr.mxu0 0.0
    %388 = vmatpush1.msra.mxu0 0.0
    %389 = vmatprep.subr.mxu0 0.0
    %390 = vmatpush1.msra.mxu0 0.0
    %391 = vmatprep.subr.mxu0 0.0
    %392 = vmatpush1.msra.mxu0 0.0
    %393 = vmatprep.subr.mxu0 0.0
    %394 = vmatpush1.msra.mxu0 0.0
    %395 = vmatprep.subr.mxu0 0.0
    %396 = vmatpush1.msra.mxu0 0.0
    %397 = vmatprep.subr.mxu0 0.0
    %398 = vmatpush1.msra.mxu0 0.0
    %399 = vmatprep.subr.mxu0 0.0
    %400 = vmatpush1.msra.mxu0 0.0
    %401 = vmatprep.subr.mxu0 0.0
    %402 = vmatpush1.msra.mxu0 0.0
    %403 = vmatprep.subr.mxu0 0.0
    %404 = vmatpush1.msra.mxu0 0.0
    %405 = vmatprep.subr.mxu0 0.0
    %406 = vmatpush1.msra.mxu0 0.0
    %407 = vmatprep.subr.mxu0 0.0
    %408 = vmatpush1.msra.mxu0 0.0
    %409 = vmatprep.subr.mxu0 0.0
    %410 = vmatpush1.msra.mxu0 0.0
    %411 = vmatprep.mubr.f32.mxu0 0.0
    %412 = vmatmul.mubr.f32.gmra.mrb[0].mxu0 %v345
    %v413 = vpop.f32.mrb[0].mxu0
    %v414 = vadd.f32 0.0, %v413
    %v415 = vpop.f32.mrb[0].mxu0
    %416 = vdwg.mxu0
    %v418 = vsel %vm82, %v340, 0
    %420 = vmatprep.subr.mxu0 0.0
    %421 = vmatpush1.msra.mxu0 %v339
    %422 = vmatprep.subr.mxu0 0.0
    %423 = vmatpush1.msra.mxu0 0.0
    %424 = vmatprep.subr.mxu0 0.0
    %425 = vmatpush1.msra.mxu0 0.0
    %426 = vmatprep.subr.mxu0 0.0
    %427 = vmatpush1.msra.mxu0 0.0
    %428 = vmatprep.subr.mxu0 0.0
    %429 = vmatpush1.msra.mxu0 0.0
    %430 = vmatprep.subr.mxu0 0.0
    %431 = vmatpush1.msra.mxu0 0.0
    %432 = vmatprep.subr.mxu0 0.0
    %433 = vmatpush1.msra.mxu0 0.0
    %434 = vmatprep.subr.mxu0 0.0
    %435 = vmatpush1.msra.mxu0 0.0
    %436 = vmatprep.subr.mxu0 0.0
    %437 = vmatpush1.msra.mxu0 0.0
    %438 = vmatprep.subr.mxu0 0.0
    %439 = vmatpush1.msra.mxu0 0.0
    %440 = vmatprep.subr.mxu0 0.0
    %441 = vmatpush1.msra.mxu0 0.0
    %442 = vmatprep.subr.mxu0 0.0
    %443 = vmatpush1.msra.mxu0 0.0
    %444 = vmatprep.subr.mxu0 0.0
    %445 = vmatpush1.msra.mxu0 0.0
    %446 = vmatprep.subr.mxu0 0.0
    %447 = vmatpush1.msra.mxu0 0.0
    %448 = vmatprep.subr.mxu0 0.0
    %449 = vmatpush1.msra.mxu0 0.0
    %450 = vmatprep.subr.mxu0 0.0
    %451 = vmatpush1.msra.mxu0 0.0
    %452 = vmatprep.subr.mxu0 0.0
    %453 = vmatpush1.msra.mxu0 0.0
    %454 = vmatprep.subr.mxu0 0.0
    %455 = vmatpush1.msra.mxu0 0.0
    %456 = vmatprep.subr.mxu0 0.0
    %457 = vmatpush1.msra.mxu0 0.0
    %458 = vmatprep.subr.mxu0 0.0
    %459 = vmatpush1.msra.mxu0 0.0
    %460 = vmatprep.subr.mxu0 0.0
    %461 = vmatpush1.msra.mxu0 0.0
    %462 = vmatprep.subr.mxu0 0.0
    %463 = vmatpush1.msra.mxu0 0.0
    %464 = vmatprep.subr.mxu0 0.0
    %465 = vmatpush1.msra.mxu0 0.0
    %466 = vmatprep.subr.mxu0 0.0
    %467 = vmatpush1.msra.mxu0 0.0
    %468 = vmatprep.subr.mxu0 0.0
    %469 = vmatpush1.msra.mxu0 0.0
    %470 = vmatprep.subr.mxu0 0.0
    %471 = vmatpush1.msra.mxu0 0.0
    %472 = vmatprep.subr.mxu0 0.0
    %473 = vmatpush1.msra.mxu0 0.0
    %474 = vmatprep.subr.mxu0 0.0
    %475 = vmatpush1.msra.mxu0 0.0
    %476 = vmatprep.subr.mxu0 0.0
    %477 = vmatpush1.msra.mxu0 0.0
    %478 = vmatprep.subr.mxu0 0.0
    %479 = vmatpush1.msra.mxu0 0.0
    %480 = vmatprep.subr.mxu0 0.0
    %481 = vmatpush1.msra.mxu0 0.0
    %482 = vmatprep.subr.mxu0 0.0
    %483 = vmatpush1.msra.mxu0 0.0
    %484 = vmatprep.mubr.f32.mxu0 0.0
    %485 = vmatmul.mubr.f32.gmra.mrb[0].mxu0 %v418
    %v486 = vpop.f32.mrb[0].mxu0
    %v487 = vadd.f32 %v414, %v486
    %v488 = vpop.f32.mrb[0].mxu0
    %489 = vdwg.mxu0
    %490 = vrot.lane.b32.xlu0 %v336, 127
    %v491 = vpop.permute.xlu0 %490
    %v492 = vmul.f32 %v491, %v74
    %s493 = scalar_lea.vmem %s4, 16
    %v494 = vld [vmem:[%s493] sm:$0xff]
    %v496 = vsel %vm82, %v494, 0
    %498 = vmatprep.subr.mxu0 0.0
    %499 = vmatpush1.msra.mxu0 %v492
    %500 = vmatprep.subr.mxu0 0.0
    %501 = vmatpush1.msra.mxu0 0.0
    %502 = vmatprep.subr.mxu0 0.0
    %503 = vmatpush1.msra.mxu0 0.0
    %504 = vmatprep.subr.mxu0 0.0
    %505 = vmatpush1.msra.mxu0 0.0
    %506 = vmatprep.subr.mxu0 0.0
    %507 = vmatpush1.msra.mxu0 0.0
    %508 = vmatprep.subr.mxu0 0.0
    %509 = vmatpush1.msra.mxu0 0.0
    %510 = vmatprep.subr.mxu0 0.0
    %511 = vmatpush1.msra.mxu0 0.0
    %512 = vmatprep.subr.mxu0 0.0
    %513 = vmatpush1.msra.mxu0 0.0
    %514 = vmatprep.subr.mxu0 0.0
    %515 = vmatpush1.msra.mxu0 0.0
    %516 = vmatprep.subr.mxu0 0.0
    %517 = vmatpush1.msra.mxu0 0.0
    %518 = vmatprep.subr.mxu0 0.0
    %519 = vmatpush1.msra.mxu0 0.0
    %520 = vmatprep.subr.mxu0 0.0
    %521 = vmatpush1.msra.mxu0 0.0
    %522 = vmatprep.subr.mxu0 0.0
    %523 = vmatpush1.msra.mxu0 0.0
    %524 = vmatprep.subr.mxu0 0.0
    %525 = vmatpush1.msra.mxu0 0.0
    %526 = vmatprep.subr.mxu0 0.0
    %527 = vmatpush1.msra.mxu0 0.0
    %528 = vmatprep.subr.mxu0 0.0
    %529 = vmatpush1.msra.mxu0 0.0
    %530 = vmatprep.subr.mxu0 0.0
    %531 = vmatpush1.msra.mxu0 0.0
    %532 = vmatprep.subr.mxu0 0.0
    %533 = vmatpush1.msra.mxu0 0.0
    %534 = vmatprep.subr.mxu0 0.0
    %535 = vmatpush1.msra.mxu0 0.0
    %536 = vmatprep.subr.mxu0 0.0
    %537 = vmatpush1.msra.mxu0 0.0
    %538 = vmatprep.subr.mxu0 0.0
    %539 = vmatpush1.msra.mxu0 0.0
    %540 = vmatprep.subr.mxu0 0.0
    %541 = vmatpush1.msra.mxu0 0.0
    %542 = vmatprep.subr.mxu0 0.0
    %543 = vmatpush1.msra.mxu0 0.0
    %544 = vmatprep.subr.mxu0 0.0
    %545 = vmatpush1.msra.mxu0 0.0
    %546 = vmatprep.subr.mxu0 0.0
    %547 = vmatpush1.msra.mxu0 0.0
    %548 = vmatprep.subr.mxu0 0.0
    %549 = vmatpush1.msra.mxu0 0.0
    %550 = vmatprep.subr.mxu0 0.0
    %551 = vmatpush1.msra.mxu0 0.0
    %552 = vmatprep.subr.mxu0 0.0
    %553 = vmatpush1.msra.mxu0 0.0
    %554 = vmatprep.subr.mxu0 0.0
    %555 = vmatpush1.msra.mxu0 0.0
    %556 = vmatprep.subr.mxu0 0.0
    %557 = vmatpush1.msra.mxu0 0.0
    %558 = vmatprep.subr.mxu0 0.0
    %559 = vmatpush1.msra.mxu0 0.0
    %560 = vmatprep.subr.mxu0 0.0
    %561 = vmatpush1.msra.mxu0 0.0
    %562 = vmatprep.mubr.f32.mxu0 0.0
    %563 = vmatmul.mubr.f32.gmra.mrb[0].mxu0 %v496
    %v564 = vpop.f32.mrb[0].mxu0
    %v565 = vadd.f32 0.0, %v564
    %v566 = vpop.f32.mrb[0].mxu0
    %567 = vdwg.mxu0
    %v568 = vadd.f32 %v487, %v565
    %v569 = vld [vmem:[%s5] sm:$0xff]
    %v570 = vld [vmem:[%s6] sm:$0xff]
    %571 = vadd.xlane.f32.xlu0 %v568
    %v572 = vpop.xlane.xlu0 %571
    %v573 = vmul.f32 %v568, %v568
    %574 = vadd.xlane.f32.xlu0 %v573
    %v575 = vpop.xlane.xlu0 %574
    %v576 = vmul.f32 %v572, 0.03125
    %v577 = vmul.f32 %v575, 0.03125
    %v578 = vmul.f32 %v576, %v576
    %v579 = vsub.f32 %v577, %v578
    %v580 = vmax.f32 %v579, 0.0
    %v581 = vadd.f32 %v580, 1e-05
    %v582 = vrsqrt.pop %v581
    %v583 = vmul.f32 %v569, %v582
    %v584 = vsub.f32 %v568, %v576
    %586 = vset.pattern.permute.xlu0 0
    %587 = vperm.xlu0 %586, %v583
    %v588 = vpop.permute.xlu0 %587
    %v590 = vmul.f32 %v584, %v588
    %592 = vset.pattern.permute.xlu0 0
    %593 = vperm.xlu0 %592, %v570
    %v594 = vpop.permute.xlu0 %593
    %v596 = vadd.f32 %v590, %v594
    %v597 = vadd.f32 %v596, %v39
    %v598 = vmax.f32 %v597, 0.0
    %599 = vst [vmem:[#allocation5] sm:$0xff] %v598
    // Predicated region
    $region34: #{tpu_custom_call.1} parent=1 // pred_check
      _
    $region35: #{tpu_custom_call.1} parent=1 // pred_check_branch
      %601 = sbr.rel (0) target = $region37
    $region36: #{tpu_custom_call.1} parent=1 // pred_region
      %s603 = ssub.s32 128, 128
      %604 = vsyncadd [#allocation4], %s603
      %s606 = sshll.u32 [#allocation5], 4
      %s607 = int_to_ptr.vmem [resolvable:$true] %s606
      %609 = dma.vmem_to_hbm [thread:$0]  %s607, 128, %s7, [#allocation4]
    $region37: #{tpu_custom_call.1} parent=1 // pred_fallthru
      _
    // Predicated region
    $region38: #{tpu_custom_call.1} parent=1 // pred_check
      _
    $region39: #{tpu_custom_call.1} parent=1 // pred_check_branch
      %611 = sbr.rel (0) target = $region41
    $region40: #{tpu_custom_call.1} parent=1 // pred_region
      %612 = dma.done [#allocation4], 128
    $region41: #{tpu_custom_call.1} parent=1 // pred_fallthru
      _
    %613 = vsyncpa [#allocation3], 1
    %614 = vsyncpa [#allocation4], 1

</llo_original>
